<compile_context>
chip_gen: v5e
topology: v5e:2x2
jax: 0.10.0
libtpu: 0.0.40
codegen_flags: <defaults>
</compile_context>

<pallas_src>
import jax
import jax.numpy as jnp
from jax.experimental import pallas as pl
from jax.experimental.pallas import tpu as pltpu


def _round_up(x, m):
    return ((x + m - 1) // m) * m


def _num_tensorcores_per_chip():
    """v7x has 2 TensorCores per chip; v5e/v6e have 1. Default to 1 if unknown."""
    try:
        kind = jax.devices()[0].device_kind.lower()
    except Exception:
        return 1
    if "v7" in kind or "7x" in kind:
        return 2
    return 1


def _dqn_kernel(x_ref, w1_ref, b1_ref, w2_ref, b2_ref, w3_ref, b3_ref, o_ref):
    # Layer 1: Linear(S -> 128) + ReLU, f32 MXU matmul with f32 accumulation.
    h1 = jnp.dot(x_ref[...], w1_ref[...], preferred_element_type=jnp.float32)
    h1 = jnp.maximum(h1 + b1_ref[...], 0.0)
    # Dropout(p=0.1) -> identity at inference.

    # Layer 2: Linear(128 -> 128) + ReLU.
    h2 = jnp.dot(h1, w2_ref[...], preferred_element_type=jnp.float32)
    h2 = jnp.maximum(h2 + b2_ref[...], 0.0)
    # Dropout(p=0.1) -> identity at inference.

    # Layer 3: Linear(128 -> 1). N=1 would waste the MXU and leave a 1-lane
    # drain, so use a VPU multiply + lane reduction; the (bt,) -> (1, bt)
    # relayout goes through the XLU (which has slack here) and yields a
    # lane-dense, unmasked store.  b3 is a scalar read from SMEM.
    row = jnp.sum(h2 * w3_ref[...], axis=-1) + b3_ref[0, 0]
    o_ref[...] = row.reshape(1, -1).astype(o_ref.dtype)


def dqn_forward(state, params, *, batch_tile=None):
    """Run the DQN MLP forward pass with a Pallas TPU kernel.

    state:  [B, state_size] float32 (state_size = embed_size * 7)
    params: dict with w1 [S,128], b1 [1,128], w2 [128,128], b2 [1,128],
            w3 [128,1], b3 [1,1]  (weights are [in, out], i.e. transposed
            relative to PyTorch nn.Linear).
    """
    B, S = state.shape
    H = params["w1"].shape[1]

    # --- batch tile selection (generation-aware) ------------------------------
    cap = 2048                               # ~17 MiB peak footprint at f32
    num_tc = _num_tensorcores_per_chip()
    if batch_tile is None:
        if num_tc >= 2 and B > 256:
            # v7x megacore: at least `num_tc` balanced grid steps so both
            # TensorCores get work (grid axis is "parallel").
            n_steps = _round_up(max(num_tc, pl.cdiv(B, cap)), num_tc)
            batch_tile = pl.cdiv(B, n_steps)
        else:
            # single-TC chips (v5e/v6e): fewest grid steps possible.
            batch_tile = cap
    batch_tile = min(batch_tile, cap)
    if batch_tile < B:
        # Multi-step grid: 128-align the tile so the (1, batch_tile) output
        # block stays lane-dense (unmasked vst) and the x block is 8-aligned.
        batch_tile = max(128, _round_up(batch_tile, 128))
    if batch_tile >= B:
        batch_tile = B                       # single step; block == full array
    grid_b = pl.cdiv(B, batch_tile)

    # --- tiny weight prep (128-element reshapes only; no pass over state) -----
    w1 = params["w1"].astype(jnp.float32)
    b1 = params["b1"].astype(jnp.float32).reshape(1, H)
    w2 = params["w2"].astype(jnp.float32)
    b2 = params["b2"].astype(jnp.float32).reshape(1, H)
    w3_row = params["w3"].astype(jnp.float32).reshape(1, H)   # [H,1] -> [1,H]
    b3 = params["b3"].astype(jnp.float32).reshape(1, 1)

    # --- VMEM budget: ~2x the actual per-tile footprint ------------------------
    bytes_x = 2 * batch_tile * S * 4           # double-buffered input tile
    bytes_out = 2 * batch_tile * 4             # double-buffered output tile
    bytes_w = 2 * (S * H + H * H + 3 * H + 1) * 4
    bytes_act = 6 * batch_tile * H * 4         # h1/h2 + elementwise temps (f32)
    vmem_limit_bytes = int(
        min(48 * 2 ** 20,
            max(4 * 2 ** 20,
                2 * (bytes_x + bytes_out + bytes_w + bytes_act))))

    out = pl.pallas_call(
        _dqn_kernel,
        out_shape=jax.ShapeDtypeStruct((1, B), jnp.float32),
        grid_spec=pltpu.PrefetchScalarGridSpec(
            num_scalar_prefetch=0,
            grid=(grid_b,),
            in_specs=[
                # per-tile batch slab of the f32 state (last dim = full = 112)
                pl.BlockSpec((batch_tile, S), lambda i: (i, 0)),
                # weights / biases: full arrays, constant index_map (resident)
                pl.BlockSpec((S, H), lambda i: (0, 0)),
                pl.BlockSpec((1, H), lambda i: (0, 0)),
                pl.BlockSpec((H, H), lambda i: (0, 0)),
                pl.BlockSpec((1, H), lambda i: (0, 0)),
                pl.BlockSpec((1, H), lambda i: (0, 0)),
                # scalar output bias lives in SMEM (no padded VMEM tile / DMA)
                pl.BlockSpec(memory_space=pltpu.MemorySpace.SMEM),
            ],
            # lane-dense output row block: (1, batch_tile) slice of (1, B)
            out_specs=pl.BlockSpec((1, batch_tile), lambda i: (0, i)),
        ),
        compiler_params=pltpu.CompilerParams(
            dimension_semantics=("parallel",),
            vmem_limit_bytes=vmem_limit_bytes,
        ),
    )(state.astype(jnp.float32), w1, b1, w2, b2, w3_row, b3)

    return out.reshape(B, 1)


def init_dqn_params(key, embed_size, hidden=128):
    """Deterministic synthetic parameters matching nn.Linear shapes.

    PyTorch nn.Linear(in, out) has weight [out, in]; we store the transpose
    [in, out] so the kernel computes x @ W + b. Init mimics PyTorch's
    uniform(-1/sqrt(in), 1/sqrt(in)).
    """
    state_size = embed_size * 7
    k = jax.random.split(key, 6)

    def lin(kw, kb, fan_in, fan_out):
        bound = 1.0 / jnp.sqrt(jnp.float32(fan_in))
        w = jax.random.uniform(kw, (fan_in, fan_out), jnp.float32, -bound, bound)
        b = jax.random.uniform(kb, (1, fan_out), jnp.float32, -bound, bound)
        return w, b

    w1, b1 = lin(k[0], k[1], state_size, hidden)
    w2, b2 = lin(k[2], k[3], hidden, hidden)
    w3, b3 = lin(k[4], k[5], hidden, 1)
    return {"w1": w1, "b1": b1, "w2": w2, "b2": b2, "w3": w3, "b3": b3}


def dqn_reference(state, params):
    """Pure-JAX f32 reference for correctness checking."""
    h1 = jnp.maximum(state @ params["w1"] + params["b1"], 0.0)
    h2 = jnp.maximum(h1 @ params["w2"] + params["b2"], 0.0)
    return h2 @ params["w3"] + params["b3"]


if __name__ == "__main__":
    embed_size = 16               # -> state_size = 112
    batch = 8                     # NOTE: at B=8 the call is launch-overhead
                                  # bound; batch replay minibatches for real use.

    key = jax.random.PRNGKey(0)
    k_params, k_state, k_state2 = jax.random.split(key, 3)

    params = init_dqn_params(k_params, embed_size)
    state = jax.random.normal(k_state, (batch, embed_size * 7), jnp.float32)

    out = jax.block_until_ready(dqn_forward(state, params))
    ref = dqn_reference(state, params)
    assert out.shape == (batch, 1), out.shape
    assert jnp.allclose(out, ref, atol=5e-2, rtol=5e-2), (
        float(jnp.max(jnp.abs(out - ref)))
    )

    # Also exercise the multi-step grid + ragged last tile + lane-dense store
    # path (explicit small batch_tile so the test stays small).
    state2 = jax.random.normal(k_state2, (272, embed_size * 7), jnp.float32)
    out2 = jax.block_until_ready(dqn_forward(state2, params, batch_tile=128))
    ref2 = dqn_reference(state2, params)
    assert out2.shape == (272, 1), out2.shape
    assert jnp.allclose(out2, ref2, atol=5e-2, rtol=5e-2), (
        float(jnp.max(jnp.abs(out2 - ref2)))
    )

    print("KERNEL_OK")
</pallas_src>

<mosaic_0001>
module attributes {stable_mosaic.version = 11 : i64} {
  func.func @_dqn_kernel(%arg0: i32, %arg1: memref<8x112xf32, #tpu.memory_space<vmem>>, %arg2: memref<112x128xf32, #tpu.memory_space<vmem>>, %arg3: memref<1x128xf32, #tpu.memory_space<vmem>>, %arg4: memref<128x128xf32, #tpu.memory_space<vmem>>, %arg5: memref<1x128xf32, #tpu.memory_space<vmem>>, %arg6: memref<1x128xf32, #tpu.memory_space<vmem>>, %arg7: memref<1x1xf32, #tpu.memory_space<smem>>, %arg8: memref<1x8xf32, #tpu.memory_space<vmem>>) attributes {dimension_semantics = [#tpu.dimension_semantics<parallel>], iteration_bounds = array<i64: 1>, scalar_prefetch = 0 : i64, scratch_operands = 0 : i64, tpu.core_type = #tpu.core_type<tc>, window_params = [{transform_indices = @transform_0, window_bounds = array<i64: 8, 112>}, {pipeline_mode = #tpu.pipeline_mode<synchronous>, transform_indices = @transform_1, window_bounds = array<i64: 112, 128>}, {pipeline_mode = #tpu.pipeline_mode<synchronous>, transform_indices = @transform_2, window_bounds = array<i64: 1, 128>}, {pipeline_mode = #tpu.pipeline_mode<synchronous>, transform_indices = @transform_3, window_bounds = array<i64: 128, 128>}, {pipeline_mode = #tpu.pipeline_mode<synchronous>, transform_indices = @transform_4, window_bounds = array<i64: 1, 128>}, {pipeline_mode = #tpu.pipeline_mode<synchronous>, transform_indices = @transform_5, window_bounds = array<i64: 1, 128>}, {transform_indices = @transform_6, window_bounds = array<i64: 1, 1>}, {transform_indices = @transform_7, window_bounds = array<i64: 1, 8>}]} {
    %c0 = arith.constant 0 : index
    %c0_0 = arith.constant 0 : index
    %0 = vector.load %arg1[%c0, %c0_0] : memref<8x112xf32, #tpu.memory_space<vmem>>, vector<8x112xf32>
    %c0_1 = arith.constant 0 : index
    %c0_2 = arith.constant 0 : index
    %1 = vector.load %arg2[%c0_1, %c0_2] : memref<112x128xf32, #tpu.memory_space<vmem>>, vector<112x128xf32>
    %cst = arith.constant dense<0.000000e+00> : vector<8x128xf32>
    %2 = tpu.matmul %0, %1, %cst {dimension_numbers = #tpu.dot_dimension_numbers<[1], [0], [0], [1], [0, 0, 1, 1], [], []>} : vector<8x112xf32>, vector<112x128xf32>, vector<8x128xf32> -> vector<8x128xf32>
    %c0_3 = arith.constant 0 : index
    %c0_4 = arith.constant 0 : index
    %3 = vector.load %arg3[%c0_3, %c0_4] : memref<1x128xf32, #tpu.memory_space<vmem>>, vector<1x128xf32>
    %4 = vector.broadcast %3 : vector<1x128xf32> to vector<8x128xf32>
    %5 = arith.addf %2, %4 : vector<8x128xf32>
    %cst_5 = arith.constant 0.000000e+00 : f32
    %6 = vector.broadcast %cst_5 : f32 to vector<8x128xf32>
    %7 = arith.maximumf %5, %6 : vector<8x128xf32>
    %c0_6 = arith.constant 0 : index
    %c0_7 = arith.constant 0 : index
    %8 = vector.load %arg4[%c0_6, %c0_7] : memref<128x128xf32, #tpu.memory_space<vmem>>, vector<128x128xf32>
    %cst_8 = arith.constant dense<0.000000e+00> : vector<8x128xf32>
    %9 = tpu.matmul %7, %8, %cst_8 {dimension_numbers = #tpu.dot_dimension_numbers<[1], [0], [0], [1], [0, 0, 1, 1], [], []>} : vector<8x128xf32>, vector<128x128xf32>, vector<8x128xf32> -> vector<8x128xf32>
    %c0_9 = arith.constant 0 : index
    %c0_10 = arith.constant 0 : index
    %10 = vector.load %arg5[%c0_9, %c0_10] : memref<1x128xf32, #tpu.memory_space<vmem>>, vector<1x128xf32>
    %11 = vector.broadcast %10 : vector<1x128xf32> to vector<8x128xf32>
    %12 = arith.addf %9, %11 : vector<8x128xf32>
    %cst_11 = arith.constant 0.000000e+00 : f32
    %13 = vector.broadcast %cst_11 : f32 to vector<8x128xf32>
    %14 = arith.maximumf %12, %13 : vector<8x128xf32>
    %c0_12 = arith.constant 0 : index
    %c0_13 = arith.constant 0 : index
    %15 = vector.load %arg6[%c0_12, %c0_13] : memref<1x128xf32, #tpu.memory_space<vmem>>, vector<1x128xf32>
    %16 = vector.broadcast %15 : vector<1x128xf32> to vector<8x128xf32>
    %17 = arith.mulf %14, %16 : vector<8x128xf32>
    %cst_14 = arith.constant dense<0.000000e+00> : vector<8xf32>
    %18 = vector.multi_reduction <add>, %17, %cst_14 [1] : vector<8x128xf32> to vector<8xf32>
    %c0_15 = arith.constant 0 : index
    %c0_16 = arith.constant 0 : index
    %19 = memref.load %arg7[%c0_15, %c0_16] : memref<1x1xf32, #tpu.memory_space<smem>>
    %20 = vector.broadcast %19 : f32 to vector<8xf32>
    %21 = arith.addf %18, %20 : vector<8xf32>
    %22 = vector.shape_cast %21 : vector<8xf32> to vector<1x8xf32>
    %c0_17 = arith.constant 0 : index
    %c0_18 = arith.constant 0 : index
    %23 = vector.load %arg8[%c0_17, %c0_18] : memref<1x8xf32, #tpu.memory_space<vmem>>, vector<1x8xf32>
    tpu.vector_store %arg8[%c0_17, %c0_18], %22 {strides = array<i32>} : memref<1x8xf32, #tpu.memory_space<vmem>>, vector<1x8xf32>,
    return
  }
  func.func @transform_0(%arg0: i32) -> (i32, i32) {
    %c0_i32 = arith.constant 0 : i32
    %c0_i32_0 = arith.constant 0 : i32
    return %arg0, %c0_i32 : i32, i32
  }
  func.func @transform_1(%arg0: i32) -> (i32, i32) {
    %c0_i32 = arith.constant 0 : i32
    %c0_i32_0 = arith.constant 0 : i32
    %c0_i32_1 = arith.constant 0 : i32
    return %c0_i32, %c0_i32_0 : i32, i32
  }
  func.func @transform_2(%arg0: i32) -> (i32, i32) {
    %c0_i32 = arith.constant 0 : i32
    %c0_i32_0 = arith.constant 0 : i32
    %c0_i32_1 = arith.constant 0 : i32
    return %c0_i32, %c0_i32_0 : i32, i32
  }
  func.func @transform_3(%arg0: i32) -> (i32, i32) {
    %c0_i32 = arith.constant 0 : i32
    %c0_i32_0 = arith.constant 0 : i32
    %c0_i32_1 = arith.constant 0 : i32
    return %c0_i32, %c0_i32_0 : i32, i32
  }
  func.func @transform_4(%arg0: i32) -> (i32, i32) {
    %c0_i32 = arith.constant 0 : i32
    %c0_i32_0 = arith.constant 0 : i32
    %c0_i32_1 = arith.constant 0 : i32
    return %c0_i32, %c0_i32_0 : i32, i32
  }
  func.func @transform_5(%arg0: i32) -> (i32, i32) {
    %c0_i32 = arith.constant 0 : i32
    %c0_i32_0 = arith.constant 0 : i32
    %c0_i32_1 = arith.constant 0 : i32
    return %c0_i32, %c0_i32_0 : i32, i32
  }
  func.func @transform_6(%arg0: i32) -> (i32, i32) {
    %c0_i32 = arith.constant 0 : i32
    %c0_i32_0 = arith.constant 0 : i32
    %c0_i32_1 = arith.constant 0 : i32
    return %c0_i32, %c0_i32_0 : i32, i32
  }
  func.func @transform_7(%arg0: i32) -> (i32, i32) {
    %c0_i32 = arith.constant 0 : i32
    %c0_i32_0 = arith.constant 0 : i32
    return %c0_i32, %arg0 : i32, i32
  }
}

</mosaic_0001>

<llo_original>
// kernel: tpu_custom_call.1
$region0: #{tpu_custom_call.1}
  #allocation0 [shape = 'u32[]', space=smem, size = 0x4, offset = 0x4, fixed_abs, tag = 'smem constant byte address 0x4 - core index']
  #allocation1 [shape = 'u32[72,128]{1,0:T(1,128)}', space=vmem, size = 0x9000, scoped, tag = 'internal scratch']
  #allocation2 [shape = 'f32[1,1]{1,0:T(1,128)S(6)}', space=smem, size = 0x200, scoped, tag = 'scoped memory for tpu_custom_call.1']
  %s0 = inlined_call_operand.hbm [shape: f32[8,112], index: 0, kind: input, shape index: {}]
  %s1 = inlined_call_operand.hbm [shape: f32[112,128], index: 1, kind: input, shape index: {}]
  %s2 = inlined_call_operand.vmem [shape: f32[1,128], index: 2, kind: input, shape index: {}]
  %s3 = inlined_call_operand.hbm [shape: f32[128,128], index: 3, kind: input, shape index: {}]
  %s4 = inlined_call_operand.vmem [shape: f32[1,128], index: 4, kind: input, shape index: {}]
  %s5 = inlined_call_operand.vmem [shape: f32[1,128], index: 5, kind: input, shape index: {}]
  %s6 = inlined_call_operand.<no memory space> [shape: f32[1,1], index: 6, kind: input, shape index: {}]
  %s7 = inlined_call_operand.hbm [shape: f32[1,8], index: 7, kind: output, shape index: {}]
  %s8 = sld [smem:[#allocation0]]
  $region50: #{tpu_custom_call.1} parent=0
    _
  %s10 = ssub.s32 1, %s8
  %s11 = scalar_select 0, %s10, %s8
  %12 = sst [smem:[#allocation2]] %s6
  $region1: #{tpu_custom_call.1} parent=0
    #allocation3 [shape = 'u8[4096]{0}', space=vmem, size = 0x1000, scoped, tag = 'input window, operand 0, single buffered']
    #allocation4 [shape = 's32[1]{0}', space=sflag, size = 0x4, scoped, tag = 'scoped memory for tpu_custom_call.1']
    #allocation5 [shape = 's32[1]{0}', space=sflag, size = 0x4, scoped, tag = 'scoped memory for tpu_custom_call.1']
    #allocation6 [shape = 'u8[57344]{0}', space=vmem, size = 0xe000, scoped, tag = 'input window, operand 1, single buffered']
    #allocation7 [shape = 's32[1]{0}', space=sflag, size = 0x4, scoped, tag = 'scoped memory for tpu_custom_call.1']
    #allocation8 [shape = 'u8[65536]{0}', space=vmem, size = 0x10000, scoped, tag = 'input window, operand 3, single buffered']
    #allocation9 [shape = 'u8[512]{0}', space=vmem, size = 0x400, scoped, tag = 'output window, operand 0, single buffered']
    %13 = vsyncpa [#allocation4], 0
    %14 = vsyncpa [#allocation7], 0
    %15 = vsyncpa [#allocation5], 0
    // Predicated region
    $region2: #{tpu_custom_call.1} parent=1 // pred_check
      _
    $region3: #{tpu_custom_call.1} parent=1 // pred_check_branch
      %17 = sbr.rel (0) target = $region5
    $region4: #{tpu_custom_call.1} parent=1 // pred_region
      %19 = vsyncadd [#allocation4], 0
      %s21 = sshll.u32 %s0, 4
      %s22 = int_to_ptr.hbm [resolvable:$true] %s21
      %s23 = sshll.u32 [#allocation3], 4
      %s24 = int_to_ptr.vmem [resolvable:$true] %s23
      %26 = dma.hbm_to_vmem [thread:$0]  %s22, 128, %s24, [#allocation4]
    $region5: #{tpu_custom_call.1} parent=1 // pred_fallthru
      _
    // Predicated region
    $region6: #{tpu_custom_call.1} parent=1 // pred_check
      _
    $region7: #{tpu_custom_call.1} parent=1 // pred_check_branch
      %28 = sbr.rel (0) target = $region9
    $region8: #{tpu_custom_call.1} parent=1 // pred_region
      %30 = vsyncadd [#allocation7], 0
      %s31 = sshll.u32 %s1, 4
      %s32 = int_to_ptr.hbm [resolvable:$true] %s31
      %s33 = sshll.u32 [#allocation6], 4
      %s34 = int_to_ptr.vmem [resolvable:$true] %s33
      %39 = dma.hbm_to_vmem [thread:$0]  %s32, 1792, %s34, [#allocation7], 128, 128, 8
    $region9: #{tpu_custom_call.1} parent=1 // pred_fallthru
      _
    // Predicated region
    $region10: #{tpu_custom_call.1} parent=1 // pred_check
      _
    $region11: #{tpu_custom_call.1} parent=1 // pred_check_branch
      %41 = sbr.rel (0) target = $region13
    $region12: #{tpu_custom_call.1} parent=1 // pred_region
      _
    $region13: #{tpu_custom_call.1} parent=1 // pred_fallthru
      _
    // Predicated region
    $region14: #{tpu_custom_call.1} parent=1 // pred_check
      _
    $region15: #{tpu_custom_call.1} parent=1 // pred_check_branch
      %43 = sbr.rel (0) target = $region17
    $region16: #{tpu_custom_call.1} parent=1 // pred_region
      %45 = vsyncadd [#allocation7], 0
      %s46 = sshll.u32 %s3, 4
      %s47 = int_to_ptr.hbm [resolvable:$true] %s46
      %s48 = sshll.u32 [#allocation8], 4
      %s49 = int_to_ptr.vmem [resolvable:$true] %s48
      %54 = dma.hbm_to_vmem [thread:$0]  %s47, 2048, %s49, [#allocation7], 128, 128, 8
    $region17: #{tpu_custom_call.1} parent=1 // pred_fallthru
      _
    // Predicated region
    $region18: #{tpu_custom_call.1} parent=1 // pred_check
      _
    $region19: #{tpu_custom_call.1} parent=1 // pred_check_branch
      %56 = sbr.rel (0) target = $region21
    $region20: #{tpu_custom_call.1} parent=1 // pred_region
      _
    $region21: #{tpu_custom_call.1} parent=1 // pred_fallthru
      _
    // Predicated region
    $region22: #{tpu_custom_call.1} parent=1 // pred_check
      _
    $region23: #{tpu_custom_call.1} parent=1 // pred_check_branch
      %58 = sbr.rel (0) target = $region25
    $region24: #{tpu_custom_call.1} parent=1 // pred_region
      _
    $region25: #{tpu_custom_call.1} parent=1 // pred_fallthru
      _
    // Predicated region
    $region26: #{tpu_custom_call.1} parent=1 // pred_check
      _
    $region27: #{tpu_custom_call.1} parent=1 // pred_check_branch
      %60 = sbr.rel (0) target = $region29
    $region28: #{tpu_custom_call.1} parent=1 // pred_region
      _
    $region29: #{tpu_custom_call.1} parent=1 // pred_fallthru
      _
    // Predicated region
    $region30: #{tpu_custom_call.1} parent=1 // pred_check
      _
    $region31: #{tpu_custom_call.1} parent=1 // pred_check_branch
      %62 = sbr.rel (0) target = $region33
    $region32: #{tpu_custom_call.1} parent=1 // pred_region
      %64 = dma.done [#allocation4], 128
    $region33: #{tpu_custom_call.1} parent=1 // pred_fallthru
      _
    // Predicated region
    $region34: #{tpu_custom_call.1} parent=1 // pred_check
      _
    $region35: #{tpu_custom_call.1} parent=1 // pred_check_branch
      %66 = sbr.rel (0) target = $region37
    $region36: #{tpu_custom_call.1} parent=1 // pred_region
      %68 = dma.done [#allocation7], 1792
    $region37: #{tpu_custom_call.1} parent=1 // pred_fallthru
      _
    // Predicated region
    $region38: #{tpu_custom_call.1} parent=1 // pred_check
      _
    $region39: #{tpu_custom_call.1} parent=1 // pred_check_branch
      %70 = sbr.rel (0) target = $region41
    $region40: #{tpu_custom_call.1} parent=1 // pred_region
      %72 = dma.done [#allocation7], 2048
    $region41: #{tpu_custom_call.1} parent=1 // pred_fallthru
      _
    %v73 = vld [vmem:[#allocation3] sm:$0xff]
    %v74 = vld [vmem:[#allocation6] sm:$0xff]
    %v75 = vld [vmem:[#allocation6 + $0x8] sm:$0xff]
    %v76 = vld [vmem:[#allocation6 + $0x10] sm:$0xff]
    %v77 = vld [vmem:[#allocation6 + $0x18] sm:$0xff]
    %v78 = vld [vmem:[#allocation6 + $0x20] sm:$0xff]
    %v79 = vld [vmem:[#allocation6 + $0x28] sm:$0xff]
    %v80 = vld [vmem:[#allocation6 + $0x30] sm:$0xff]
    %v81 = vld [vmem:[#allocation6 + $0x38] sm:$0xff]
    %v82 = vld [vmem:[#allocation6 + $0x40] sm:$0xff]
    %v83 = vld [vmem:[#allocation6 + $0x48] sm:$0xff]
    %v84 = vld [vmem:[#allocation6 + $0x50] sm:$0xff]
    %v85 = vld [vmem:[#allocation6 + $0x58] sm:$0xff]
    %v86 = vld [vmem:[#allocation6 + $0x60] sm:$0xff]
    %v87 = vld [vmem:[#allocation6 + $0x68] sm:$0xff]
    %v88 = vld [vmem:[%s2] sm:$0x1]
    %v90 = vperm.slane %v88, 0
    %vm92 = vcmask 916480
    %v94 = vsel %vm92, %v73, 0
    %96 = vmatpush.msra.mxu0 0.0
    %97 = vmatpush.msra.mxu0 0.0
    %98 = vmatpush.msra.mxu0 %v87
    %99 = vmatpush.msra.mxu0 %v86
    %100 = vmatpush.msra.mxu0 %v85
    %101 = vmatpush.msra.mxu0 %v84
    %102 = vmatpush.msra.mxu0 %v83
    %103 = vmatpush.msra.mxu0 %v82
    %104 = vmatpush.msra.mxu0 %v81
    %105 = vmatpush.msra.mxu0 %v80
    %106 = vmatpush.msra.mxu0 %v79
    %107 = vmatpush.msra.mxu0 %v78
    %108 = vmatpush.msra.mxu0 %v77
    %109 = vmatpush.msra.mxu0 %v76
    %110 = vmatpush.msra.mxu0 %v75
    %111 = vmatpush.msra.mxu0 %v74
    %112 = vmatmul.f32.gmra.mxu0 %v94
    %v113 = vpop.f32.mrf.mxu0
    %v114 = vadd.f32 %v90, %v113
    %115 = vdwg.mxu0
    %v116 = vmax.f32 %v114, 0.0
    %v117 = vld [vmem:[#allocation8] sm:$0xff]
    %v118 = vld [vmem:[#allocation8 + $0x8] sm:$0xff]
    %v119 = vld [vmem:[#allocation8 + $0x10] sm:$0xff]
    %v120 = vld [vmem:[#allocation8 + $0x18] sm:$0xff]
    %v121 = vld [vmem:[#allocation8 + $0x20] sm:$0xff]
    %v122 = vld [vmem:[#allocation8 + $0x28] sm:$0xff]
    %v123 = vld [vmem:[#allocation8 + $0x30] sm:$0xff]
    %v124 = vld [vmem:[#allocation8 + $0x38] sm:$0xff]
    %v125 = vld [vmem:[#allocation8 + $0x40] sm:$0xff]
    %v126 = vld [vmem:[#allocation8 + $0x48] sm:$0xff]
    %v127 = vld [vmem:[#allocation8 + $0x50] sm:$0xff]
    %v128 = vld [vmem:[#allocation8 + $0x58] sm:$0xff]
    %v129 = vld [vmem:[#allocation8 + $0x60] sm:$0xff]
    %v130 = vld [vmem:[#allocation8 + $0x68] sm:$0xff]
    %v131 = vld [vmem:[#allocation8 + $0x70] sm:$0xff]
    %v132 = vld [vmem:[#allocation8 + $0x78] sm:$0xff]
    %v133 = vld [vmem:[%s4] sm:$0x1]
    %v135 = vperm.slane %v133, 0
    %137 = vmatpush.msra.mxu0 %v132
    %138 = vmatpush.msra.mxu0 %v131
    %139 = vmatpush.msra.mxu0 %v130
    %140 = vmatpush.msra.mxu0 %v129
    %141 = vmatpush.msra.mxu0 %v128
    %142 = vmatpush.msra.mxu0 %v127
    %143 = vmatpush.msra.mxu0 %v126
    %144 = vmatpush.msra.mxu0 %v125
    %145 = vmatpush.msra.mxu0 %v124
    %146 = vmatpush.msra.mxu0 %v123
    %147 = vmatpush.msra.mxu0 %v122
    %148 = vmatpush.msra.mxu0 %v121
    %149 = vmatpush.msra.mxu0 %v120
    %150 = vmatpush.msra.mxu0 %v119
    %151 = vmatpush.msra.mxu0 %v118
    %152 = vmatpush.msra.mxu0 %v117
    %153 = vmatmul.f32.gmra.mxu0 %v116
    %v154 = vpop.f32.mrf.mxu0
    %v155 = vadd.f32 %v135, %v154
    %156 = vdwg.mxu0
    %v157 = vmax.f32 %v155, 0.0
    %v158 = vld [vmem:[%s5] sm:$0x1]
    %v160 = vperm.slane %v158, 0
    %v162 = vmul.f32 %v157, %v160
    %163 = vadd.xlane.f32.xlu0 %v162
    %v164 = vpop.xlane.xlu0 %163
    %s165 = sld [smem:[#allocation2]]
    %v166 = vstv %s165
    %v167 = vadd.f32 %v164, %v166
    %v169 = vlaneseq
    %v170 = vand.u32 %v169, 127
    %v171 = vperm.slane %v167, %v170
    %vm173 = vcmask 57344
    %174 = vst.msk [vmem:[#allocation9] sm:$0x1] %vm173, %v171
    // Predicated region
    $region42: #{tpu_custom_call.1} parent=1 // pred_check
      _
    $region43: #{tpu_custom_call.1} parent=1 // pred_check_branch
      %176 = sbr.rel (0) target = $region45
    $region44: #{tpu_custom_call.1} parent=1 // pred_region
      %178 = vsyncadd [#allocation5], 0
      %s180 = sshll.u32 [#allocation9], 4
      %s181 = int_to_ptr.vmem [resolvable:$true] %s180
      %s182 = sshll.u32 %s7, 4
      %s183 = int_to_ptr.hbm [resolvable:$true] %s182
      %185 = dma.vmem_to_hbm [thread:$0]  %s181, 16, %s183, [#allocation5]
    $region45: #{tpu_custom_call.1} parent=1 // pred_fallthru
      _
    // Predicated region
    $region46: #{tpu_custom_call.1} parent=1 // pred_check
      _
    $region47: #{tpu_custom_call.1} parent=1 // pred_check_branch
      %187 = sbr.rel (0) target = $region49
    $region48: #{tpu_custom_call.1} parent=1 // pred_region
      %189 = dma.done [#allocation5], 16
    $region49: #{tpu_custom_call.1} parent=1 // pred_fallthru
      _
    %190 = vsyncpa [#allocation4], 1
    %191 = vsyncpa [#allocation7], 1
    %192 = vsyncpa [#allocation5], 1

</llo_original>
